<compile_context>
chip_gen: v7x
topology: tpu7x:2x2x1
jax: 0.10.0
libtpu: 0.0.40
codegen_flags: <defaults>
</compile_context>

<pallas_src>
import jax
import jax.numpy as jnp
from jax.experimental import pallas as pl
from jax.experimental.pallas import tpu as pltpu

FEAT_DIM = 512       # resnet18 path of Net: nn.Linear(512, num_class)
NUM_CLASS = 10
LANE = 128           # TPU lane width


def net_kernel(x_ref, w_ref, b_ref, o_ref):
    # x_ref: (TB, HW, C)       activations (bf16 or f32), C on the lane axis
    # w_ref: (C, OUT_PAD) f32  fc weight, transposed to (in, out), pre-scaled by 1/HW
    # b_ref: (1, OUT_PAD) f32  fc bias (zero-padded to OUT_PAD lanes)
    # o_ref: (TB, OUT_PAD) f32 padded logits
    x = x_ref[...].astype(jnp.float32)
    # AdaptiveAvgPool2d(1) + flatten: the 1/HW scale is folded into w, so just sum.
    feat = jnp.sum(x, axis=1)                                          # (TB, C)
    out = jnp.dot(feat, w_ref[...], preferred_element_type=jnp.float32)
    o_ref[...] = out + b_ref[...]


def _pick_batch_tile(batch, hw, c, out_pad, act_bytes,
                     vmem_budget=20 * 1024 * 1024):
    """Largest batch tile whose double-buffered VMEM footprint fits the budget."""
    per_row = (2 * hw * c * act_bytes   # x tile, double-buffered by the pipeline
               + hw * c * 4            # f32 upcast of the tile inside the kernel
               + c * 4                 # feat row
               + 2 * out_pad * 4)      # out tile, double-buffered
    resident = c * out_pad * 4 + out_pad * 4   # w + b stay VMEM-resident
    tb = (vmem_budget - resident) // per_row
    tb = int(max(1, min(tb, 512, batch)))
    if tb >= batch:
        return batch                          # single block: block dims == array dims
    # 8-align the sublane-adjacent batch dim for clean layouts; Pallas masks the
    # ragged last block so tb need not divide the batch.
    return max(8, (tb // 8) * 8)


def net_forward(x_nchw, w, b, *, activation_dtype=jnp.bfloat16):
    """AdaptiveAvgPool2d(1) + flatten + nn.Linear as one Pallas kernel.

    x_nchw: (B, C, H, W)   pre-pool backbone activations (PyTorch NCHW)
    w:      (C, num_class) fc weight, already transposed to (in, out)
    b:      (num_class,)   fc bias
    """
    B, C, H, W = x_nchw.shape
    HW = H * W
    num_class = w.shape[1]

    # NCHW -> (B, HW, C): put C=512 on the lane axis (lane-dense, 512 % 128 == 0).
    x = jnp.transpose(x_nchw, (0, 2, 3, 1)).reshape(B, HW, C).astype(activation_dtype)

    # Lane-dense classifier: pad the out dim to a multiple of 128, fold 1/HW into w.
    out_pad = max(LANE, -(-num_class // LANE) * LANE)
    w_p = jnp.zeros((C, out_pad), jnp.float32)
    w_p = w_p.at[:, :num_class].set(w.astype(jnp.float32) / jnp.float32(HW))
    b_p = jnp.zeros((1, out_pad), jnp.float32)
    b_p = b_p.at[:, :num_class].set(b.astype(jnp.float32))

    act_bytes = jnp.dtype(activation_dtype).itemsize
    tb = _pick_batch_tile(B, HW, C, out_pad, act_bytes)
    grid = (pl.cdiv(B, tb),)

    cost = pl.CostEstimate(
        flops=2 * B * C * out_pad + B * HW * C,
        transcendentals=0,
        bytes_accessed=(B * HW * C * act_bytes
                        + C * out_pad * 4 + out_pad * 4
                        + B * out_pad * 4),
    )

    out = pl.pallas_call(
        net_kernel,
        out_shape=jax.ShapeDtypeStruct((B, out_pad), jnp.float32),
        grid=grid,
        in_specs=[
            pl.BlockSpec((tb, HW, C), lambda i: (i, 0, 0)),   # batch-tiled activations
            pl.BlockSpec((C, out_pad), lambda i: (0, 0)),     # resident weight
            pl.BlockSpec((1, out_pad), lambda i: (0, 0)),     # resident bias
        ],
        out_specs=pl.BlockSpec((tb, out_pad), lambda i: (i, 0)),
        compiler_params=pltpu.CompilerParams(
            dimension_semantics=("parallel",),       # megacore split on v7x, no-op elsewhere
            vmem_limit_bytes=32 * 1024 * 1024,
        ),
        cost_estimate=cost,
    )(x, w_p, b_p)

    return out[:, :num_class]


def init_fc_params(key, in_dim, num_class):
    # Deterministic stand-in for nn.Linear default init (uniform ±1/sqrt(fan_in)).
    kw, kb = jax.random.split(key)
    bound = 1.0 / jnp.sqrt(jnp.float32(in_dim))
    w = jax.random.uniform(kw, (in_dim, num_class), jnp.float32, -bound, bound)
    b = jax.random.uniform(kb, (num_class,), jnp.float32, -bound, bound)
    return w, b


def reference(x_nchw, w, b, activation_dtype):
    # Pure-JAX reference of the same forward semantics (pool -> flatten -> fc).
    B, C, H, W = x_nchw.shape
    xr = x_nchw.astype(activation_dtype).astype(jnp.float32)
    feat = jnp.mean(xr.reshape(B, C, H * W), axis=-1)
    return jnp.dot(feat, w, precision=jax.lax.Precision.HIGHEST) + b


if __name__ == "__main__":
    # TODO(synk): the ResNet backbone `self.f` is defined in an external
    # model.py / model_resnet18.py that was not provided; only its avg-pool
    # tail + flatten + fc classifier (the parts Net itself defines) are here.
    key = jax.random.PRNGKey(0)
    kx, kp = jax.random.split(key)

    B, C, H, W = 2, FEAT_DIM, 4, 4              # small pre-pool activation map
    x = jax.random.normal(kx, (B, C, H, W), jnp.float32)
    w, b = init_fc_params(kp, FEAT_DIM, NUM_CLASS)

    # Default fast path: bf16 activations, f32 accumulation.
    out = jax.block_until_ready(net_forward(x, w, b))
    assert out.shape == (B, NUM_CLASS)
    assert jnp.allclose(out, reference(x, w, b, jnp.bfloat16), atol=5e-3, rtol=5e-3)

    # f32 activation path: same semantics, tighter numerics.
    out_f32 = jax.block_until_ready(net_forward(x, w, b, activation_dtype=jnp.float32))
    assert jnp.allclose(out_f32, reference(x, w, b, jnp.float32), atol=5e-3, rtol=5e-3)

    # Larger, non-tile-divisible batch to exercise the ragged-last-block path.
    B2 = 37
    x2 = jax.random.normal(kx, (B2, FEAT_DIM, 4, 4), jnp.float32)
    out2 = jax.block_until_ready(net_forward(x2, w, b))
    assert out2.shape == (B2, NUM_CLASS)
    assert jnp.allclose(out2, reference(x2, w, b, jnp.bfloat16), atol=5e-3, rtol=5e-3)

    print("KERNEL_OK")
</pallas_src>

<mosaic_0001>
module attributes {stable_mosaic.version = 11 : i64} {
  func.func @net_kernel(%arg0: i32, %arg1: memref<2x16x512xbf16, #tpu.memory_space<vmem>>, %arg2: memref<512x128xf32, #tpu.memory_space<vmem>>, %arg3: memref<1x128xf32, #tpu.memory_space<vmem>>, %arg4: memref<2x128xf32, #tpu.memory_space<vmem>>) attributes {dimension_semantics = [#tpu.dimension_semantics<parallel>], iteration_bounds = array<i64: 1>, scalar_prefetch = 0 : i64, scratch_operands = 0 : i64, tpu.core_type = #tpu.core_type<tc>, window_params = [{transform_indices = @transform_0, window_bounds = array<i64: 2, 16, 512>}, {pipeline_mode = #tpu.pipeline_mode<synchronous>, transform_indices = @transform_1, window_bounds = array<i64: 512, 128>}, {pipeline_mode = #tpu.pipeline_mode<synchronous>, transform_indices = @transform_2, window_bounds = array<i64: 1, 128>}, {transform_indices = @transform_3, window_bounds = array<i64: 2, 128>}]} {
    %c0 = arith.constant 0 : index
    %c0_0 = arith.constant 0 : index
    %c0_1 = arith.constant 0 : index
    %0 = vector.load %arg1[%c0, %c0_0, %c0_1] : memref<2x16x512xbf16, #tpu.memory_space<vmem>>, vector<2x16x512xbf16>
    %1 = arith.extf %0 : vector<2x16x512xbf16> to vector<2x16x512xf32>
    %cst = arith.constant dense<0.000000e+00> : vector<2x512xf32>
    %2 = vector.multi_reduction <add>, %1, %cst [1] : vector<2x16x512xf32> to vector<2x512xf32>
    %c0_2 = arith.constant 0 : index
    %c0_3 = arith.constant 0 : index
    %3 = vector.load %arg2[%c0_2, %c0_3] : memref<512x128xf32, #tpu.memory_space<vmem>>, vector<512x128xf32>
    %cst_4 = arith.constant dense<0.000000e+00> : vector<2x128xf32>
    %4 = tpu.matmul %2, %3, %cst_4 {dimension_numbers = #tpu.dot_dimension_numbers<[1], [0], [0], [1], [0, 0, 1, 1], [], []>} : vector<2x512xf32>, vector<512x128xf32>, vector<2x128xf32> -> vector<2x128xf32>
    %c0_5 = arith.constant 0 : index
    %c0_6 = arith.constant 0 : index
    %5 = vector.load %arg3[%c0_5, %c0_6] : memref<1x128xf32, #tpu.memory_space<vmem>>, vector<1x128xf32>
    %6 = vector.broadcast %5 : vector<1x128xf32> to vector<2x128xf32>
    %7 = arith.addf %4, %6 : vector<2x128xf32>
    %c0_7 = arith.constant 0 : index
    %c0_8 = arith.constant 0 : index
    %8 = vector.load %arg4[%c0_7, %c0_8] : memref<2x128xf32, #tpu.memory_space<vmem>>, vector<2x128xf32>
    tpu.vector_store %arg4[%c0_7, %c0_8], %7 {strides = array<i32>} : memref<2x128xf32, #tpu.memory_space<vmem>>, vector<2x128xf32>,
    return
  }
  func.func @transform_0(%arg0: i32) -> (i32, i32, i32) {
    %c0_i32 = arith.constant 0 : i32
    %c0_i32_0 = arith.constant 0 : i32
    %c0_i32_1 = arith.constant 0 : i32
    return %arg0, %c0_i32, %c0_i32_0 : i32, i32, i32
  }
  func.func @transform_1(%arg0: i32) -> (i32, i32) {
    %c0_i32 = arith.constant 0 : i32
    %c0_i32_0 = arith.constant 0 : i32
    %c0_i32_1 = arith.constant 0 : i32
    return %c0_i32, %c0_i32_0 : i32, i32
  }
  func.func @transform_2(%arg0: i32) -> (i32, i32) {
    %c0_i32 = arith.constant 0 : i32
    %c0_i32_0 = arith.constant 0 : i32
    %c0_i32_1 = arith.constant 0 : i32
    return %c0_i32, %c0_i32_0 : i32, i32
  }
  func.func @transform_3(%arg0: i32) -> (i32, i32) {
    %c0_i32 = arith.constant 0 : i32
    %c0_i32_0 = arith.constant 0 : i32
    return %arg0, %c0_i32 : i32, i32
  }
}

</mosaic_0001>

<llo_original>
// kernel: tpu_custom_call.1
$region0: #{tpu_custom_call.1}
  #allocation0 [shape = 'u32[]', space=smem, size = 0x4, offset = 0x4, fixed_abs, tag = 'smem constant byte address 0x4 - core index']
  #allocation1 [shape = 'u32[144,128]{1,0:T(1,128)}', space=vmem, size = 0x12000, scoped, tag = 'internal scratch']
  %s0 = inlined_call_operand.hbm [shape: bf16[2,16,512], index: 0, kind: input, shape index: {}]
  %s1 = inlined_call_operand.hbm [shape: f32[512,128], index: 1, kind: input, shape index: {}]
  %s2 = inlined_call_operand.vmem [shape: f32[1,128], index: 2, kind: input, shape index: {}]
  %s3 = inlined_call_operand.hbm [shape: f32[2,128], index: 3, kind: output, shape index: {}]
  %s4 = sld [smem:[#allocation0]]
  $region30: #{tpu_custom_call.1} parent=0
    _
  %s6 = ssub.s32 1, %s4
  %s7 = scalar_select 0, %s6, %s4
  $region1: #{tpu_custom_call.1} parent=0
    #allocation2 [shape = 'u8[32768]{0}', space=vmem, size = 0x8000, scoped, tag = 'input window, operand 0, single buffered']
    #allocation3 [shape = 's32[1]{0}', space=sflag, size = 0x4, scoped, tag = 'scoped memory for tpu_custom_call.1']
    #allocation4 [shape = 's32[1]{0}', space=sflag, size = 0x4, scoped, tag = 'scoped memory for tpu_custom_call.1']
    #allocation5 [shape = 'u8[262144]{0}', space=vmem, size = 0x40000, scoped, tag = 'input window, operand 1, single buffered']
    #allocation6 [shape = 's32[1]{0}', space=sflag, size = 0x4, scoped, tag = 'scoped memory for tpu_custom_call.1']
    #allocation7 [shape = 'u8[1024]{0}', space=vmem, size = 0x400, scoped, tag = 'output window, operand 0, single buffered']
    %8 = vsyncpa [#allocation3], 0
    %9 = vsyncpa [#allocation6], 0
    %10 = vsyncpa [#allocation4], 0
    // Predicated region
    $region2: #{tpu_custom_call.1} parent=1 // pred_check
      _
    $region3: #{tpu_custom_call.1} parent=1 // pred_check_branch
      %12 = sbr.rel (0) target = $region5
    $region4: #{tpu_custom_call.1} parent=1 // pred_region
      %s14 = ssub.s32 1024, 1024
      %15 = vsyncadd [#allocation3], %s14
      %s16 = sshll.u32 [#allocation2], 4
      %s17 = int_to_ptr.vmem [resolvable:$true] %s16
      %22 = dma.hbm_to_vmem [thread:$0]  %s0, 1024, %s17, [#allocation3], 256, 256, 16
    $region5: #{tpu_custom_call.1} parent=1 // pred_fallthru
      _
    // Predicated region
    $region6: #{tpu_custom_call.1} parent=1 // pred_check
      _
    $region7: #{tpu_custom_call.1} parent=1 // pred_check_branch
      %24 = sbr.rel (0) target = $region9
    $region8: #{tpu_custom_call.1} parent=1 // pred_region
      %s26 = ssub.s32 8192, 8192
      %27 = vsyncadd [#allocation6], %s26
      %s28 = sshll.u32 [#allocation5], 4
      %s29 = int_to_ptr.vmem [resolvable:$true] %s28
      %34 = dma.hbm_to_vmem [thread:$0]  %s1, 8192, %s29, [#allocation6], 128, 128, 8
    $region9: #{tpu_custom_call.1} parent=1 // pred_fallthru
      _
    // Predicated region
    $region10: #{tpu_custom_call.1} parent=1 // pred_check
      _
    $region11: #{tpu_custom_call.1} parent=1 // pred_check_branch
      %36 = sbr.rel (0) target = $region13
    $region12: #{tpu_custom_call.1} parent=1 // pred_region
      _
    $region13: #{tpu_custom_call.1} parent=1 // pred_fallthru
      _
    // Predicated region
    $region14: #{tpu_custom_call.1} parent=1 // pred_check
      _
    $region15: #{tpu_custom_call.1} parent=1 // pred_check_branch
      %38 = sbr.rel (0) target = $region17
    $region16: #{tpu_custom_call.1} parent=1 // pred_region
      %39 = dma.done [#allocation3], 1024
    $region17: #{tpu_custom_call.1} parent=1 // pred_fallthru
      _
    // Predicated region
    $region18: #{tpu_custom_call.1} parent=1 // pred_check
      _
    $region19: #{tpu_custom_call.1} parent=1 // pred_check_branch
      %41 = sbr.rel (0) target = $region21
    $region20: #{tpu_custom_call.1} parent=1 // pred_region
      %42 = dma.done [#allocation6], 8192
    $region21: #{tpu_custom_call.1} parent=1 // pred_fallthru
      _
    %v43 = vld [vmem:[#allocation2] sm:$0xff]
    %v44 = vld [vmem:[#allocation2 + $0x8] sm:$0xff]
    %v45 = vld [vmem:[#allocation2 + $0x10] sm:$0xff]
    %v46 = vld [vmem:[#allocation2 + $0x18] sm:$0xff]
    %v47 = vld [vmem:[#allocation2 + $0x20] sm:$0xff]
    %v48 = vld [vmem:[#allocation2 + $0x28] sm:$0xff]
    %v49 = vld [vmem:[#allocation2 + $0x30] sm:$0xff]
    %v50 = vld [vmem:[#allocation2 + $0x38] sm:$0xff]
    %v51 = vunpack.c.l.bf16 %v43
    %v52 = vunpack.c.h.bf16 %v43
    %v53 = vunpack.c.l.bf16 %v44
    %v54 = vunpack.c.h.bf16 %v44
    %v55 = vunpack.c.l.bf16 %v45
    %v56 = vunpack.c.h.bf16 %v45
    %v57 = vunpack.c.l.bf16 %v46
    %v58 = vunpack.c.h.bf16 %v46
    %v59 = vunpack.c.l.bf16 %v47
    %v60 = vunpack.c.h.bf16 %v47
    %v61 = vunpack.c.l.bf16 %v48
    %v62 = vunpack.c.h.bf16 %v48
    %v63 = vunpack.c.l.bf16 %v49
    %v64 = vunpack.c.h.bf16 %v49
    %v65 = vunpack.c.l.bf16 %v50
    %v66 = vunpack.c.h.bf16 %v50
    %v67 = vadd.f32 %v51, %v55
    %v68 = vrot.slane %v67, 4
    %v69 = vadd.f32 %v67, %v68
    %v70 = vrot.slane %v69, 2
    %v71 = vadd.f32 %v69, %v70
    %v72 = vrot.slane %v71, 1
    %v73 = vadd.f32 %v71, %v72
    %v74 = vadd.f32 %v52, %v56
    %v75 = vrot.slane %v74, 4
    %v76 = vadd.f32 %v74, %v75
    %v77 = vrot.slane %v76, 2
    %v78 = vadd.f32 %v76, %v77
    %v79 = vrot.slane %v78, 1
    %v80 = vadd.f32 %v78, %v79
    %v81 = vadd.f32 %v53, %v57
    %v82 = vrot.slane %v81, 4
    %v83 = vadd.f32 %v81, %v82
    %v84 = vrot.slane %v83, 2
    %v85 = vadd.f32 %v83, %v84
    %v86 = vrot.slane %v85, 1
    %v87 = vadd.f32 %v85, %v86
    %v88 = vadd.f32 %v54, %v58
    %v89 = vrot.slane %v88, 4
    %v90 = vadd.f32 %v88, %v89
    %v91 = vrot.slane %v90, 2
    %v92 = vadd.f32 %v90, %v91
    %v93 = vrot.slane %v92, 1
    %v94 = vadd.f32 %v92, %v93
    %v95 = vadd.f32 %v59, %v63
    %v96 = vrot.slane %v95, 4
    %v97 = vadd.f32 %v95, %v96
    %v98 = vrot.slane %v97, 2
    %v99 = vadd.f32 %v97, %v98
    %v100 = vrot.slane %v99, 1
    %v101 = vadd.f32 %v99, %v100
    %v102 = vadd.f32 %v60, %v64
    %v103 = vrot.slane %v102, 4
    %v104 = vadd.f32 %v102, %v103
    %v105 = vrot.slane %v104, 2
    %v106 = vadd.f32 %v104, %v105
    %v107 = vrot.slane %v106, 1
    %v108 = vadd.f32 %v106, %v107
    %v109 = vadd.f32 %v61, %v65
    %v110 = vrot.slane %v109, 4
    %v111 = vadd.f32 %v109, %v110
    %v112 = vrot.slane %v111, 2
    %v113 = vadd.f32 %v111, %v112
    %v114 = vrot.slane %v113, 1
    %v115 = vadd.f32 %v113, %v114
    %v116 = vadd.f32 %v62, %v66
    %v117 = vrot.slane %v116, 4
    %v118 = vadd.f32 %v116, %v117
    %v119 = vrot.slane %v118, 2
    %v120 = vadd.f32 %v118, %v119
    %v121 = vrot.slane %v120, 1
    %v122 = vadd.f32 %v120, %v121
    %v123 = vld [vmem:[#allocation5] sm:$0xff]
    %v124 = vld [vmem:[#allocation5 + $0x8] sm:$0xff]
    %v125 = vld [vmem:[#allocation5 + $0x10] sm:$0xff]
    %v126 = vld [vmem:[#allocation5 + $0x18] sm:$0xff]
    %v127 = vld [vmem:[#allocation5 + $0x20] sm:$0xff]
    %v128 = vld [vmem:[#allocation5 + $0x28] sm:$0xff]
    %v129 = vld [vmem:[#allocation5 + $0x30] sm:$0xff]
    %v130 = vld [vmem:[#allocation5 + $0x38] sm:$0xff]
    %v131 = vld [vmem:[#allocation5 + $0x40] sm:$0xff]
    %v132 = vld [vmem:[#allocation5 + $0x48] sm:$0xff]
    %v133 = vld [vmem:[#allocation5 + $0x50] sm:$0xff]
    %v134 = vld [vmem:[#allocation5 + $0x58] sm:$0xff]
    %v135 = vld [vmem:[#allocation5 + $0x60] sm:$0xff]
    %v136 = vld [vmem:[#allocation5 + $0x68] sm:$0xff]
    %v137 = vld [vmem:[#allocation5 + $0x70] sm:$0xff]
    %v138 = vld [vmem:[#allocation5 + $0x78] sm:$0xff]
    %v139 = vld [vmem:[#allocation5 + $0x80] sm:$0xff]
    %v140 = vld [vmem:[#allocation5 + $0x88] sm:$0xff]
    %v141 = vld [vmem:[#allocation5 + $0x90] sm:$0xff]
    %v142 = vld [vmem:[#allocation5 + $0x98] sm:$0xff]
    %v143 = vld [vmem:[#allocation5 + $0xa0] sm:$0xff]
    %v144 = vld [vmem:[#allocation5 + $0xa8] sm:$0xff]
    %v145 = vld [vmem:[#allocation5 + $0xb0] sm:$0xff]
    %v146 = vld [vmem:[#allocation5 + $0xb8] sm:$0xff]
    %v147 = vld [vmem:[#allocation5 + $0xc0] sm:$0xff]
    %v148 = vld [vmem:[#allocation5 + $0xc8] sm:$0xff]
    %v149 = vld [vmem:[#allocation5 + $0xd0] sm:$0xff]
    %v150 = vld [vmem:[#allocation5 + $0xd8] sm:$0xff]
    %v151 = vld [vmem:[#allocation5 + $0xe0] sm:$0xff]
    %v152 = vld [vmem:[#allocation5 + $0xe8] sm:$0xff]
    %v153 = vld [vmem:[#allocation5 + $0xf0] sm:$0xff]
    %v154 = vld [vmem:[#allocation5 + $0xf8] sm:$0xff]
    %v155 = vld [vmem:[#allocation5 + $0x100] sm:$0xff]
    %v156 = vld [vmem:[#allocation5 + $0x108] sm:$0xff]
    %v157 = vld [vmem:[#allocation5 + $0x110] sm:$0xff]
    %v158 = vld [vmem:[#allocation5 + $0x118] sm:$0xff]
    %v159 = vld [vmem:[#allocation5 + $0x120] sm:$0xff]
    %v160 = vld [vmem:[#allocation5 + $0x128] sm:$0xff]
    %v161 = vld [vmem:[#allocation5 + $0x130] sm:$0xff]
    %v162 = vld [vmem:[#allocation5 + $0x138] sm:$0xff]
    %v163 = vld [vmem:[#allocation5 + $0x140] sm:$0xff]
    %v164 = vld [vmem:[#allocation5 + $0x148] sm:$0xff]
    %v165 = vld [vmem:[#allocation5 + $0x150] sm:$0xff]
    %v166 = vld [vmem:[#allocation5 + $0x158] sm:$0xff]
    %v167 = vld [vmem:[#allocation5 + $0x160] sm:$0xff]
    %v168 = vld [vmem:[#allocation5 + $0x168] sm:$0xff]
    %v169 = vld [vmem:[#allocation5 + $0x170] sm:$0xff]
    %v170 = vld [vmem:[#allocation5 + $0x178] sm:$0xff]
    %v171 = vld [vmem:[#allocation5 + $0x180] sm:$0xff]
    %v172 = vld [vmem:[#allocation5 + $0x188] sm:$0xff]
    %v173 = vld [vmem:[#allocation5 + $0x190] sm:$0xff]
    %v174 = vld [vmem:[#allocation5 + $0x198] sm:$0xff]
    %v175 = vld [vmem:[#allocation5 + $0x1a0] sm:$0xff]
    %v176 = vld [vmem:[#allocation5 + $0x1a8] sm:$0xff]
    %v177 = vld [vmem:[#allocation5 + $0x1b0] sm:$0xff]
    %v178 = vld [vmem:[#allocation5 + $0x1b8] sm:$0xff]
    %v179 = vld [vmem:[#allocation5 + $0x1c0] sm:$0xff]
    %v180 = vld [vmem:[#allocation5 + $0x1c8] sm:$0xff]
    %v181 = vld [vmem:[#allocation5 + $0x1d0] sm:$0xff]
    %v182 = vld [vmem:[#allocation5 + $0x1d8] sm:$0xff]
    %v183 = vld [vmem:[#allocation5 + $0x1e0] sm:$0xff]
    %v184 = vld [vmem:[#allocation5 + $0x1e8] sm:$0xff]
    %v185 = vld [vmem:[#allocation5 + $0x1f0] sm:$0xff]
    %v186 = vld [vmem:[#allocation5 + $0x1f8] sm:$0xff]
    %v187 = vld [vmem:[%s2] sm:$0x1]
    %v189 = vlaneseq
    %v190 = vshrl.u32 %v189, 7
    %v191 = vsub.s32 0, %v190
    %v192 = vrot.slane %v187, %v191
    %vm202 = vcmask 1041409
    %v203 = vsel %vm202, %v101, %v73
    %v204 = vsel %vm202, %v108, %v80
    %v205 = vsel %vm202, %v115, %v87
    %v206 = vsel %vm202, %v122, %v94
    %211 = vmatprep.subr.mxu0 0.0
    %212 = vmatpush1.msra.mxu0 %v123
    %213 = vmatprep.subr.mxu0 0.0
    %214 = vmatpush1.msra.mxu0 %v124
    %215 = vmatprep.subr.mxu0 0.0
    %216 = vmatpush1.msra.mxu0 %v125
    %217 = vmatprep.subr.mxu0 0.0
    %218 = vmatpush1.msra.mxu0 %v126
    %219 = vmatprep.subr.mxu0 0.0
    %220 = vmatpush1.msra.mxu0 %v127
    %221 = vmatprep.subr.mxu0 0.0
    %222 = vmatpush1.msra.mxu0 %v128
    %223 = vmatprep.subr.mxu0 0.0
    %224 = vmatpush1.msra.mxu0 %v129
    %225 = vmatprep.subr.mxu0 0.0
    %226 = vmatpush1.msra.mxu0 %v130
    %227 = vmatprep.subr.mxu0 0.0
    %228 = vmatpush1.msra.mxu0 %v131
    %229 = vmatprep.subr.mxu0 0.0
    %230 = vmatpush1.msra.mxu0 %v132
    %231 = vmatprep.subr.mxu0 0.0
    %232 = vmatpush1.msra.mxu0 %v133
    %233 = vmatprep.subr.mxu0 0.0
    %234 = vmatpush1.msra.mxu0 %v134
    %235 = vmatprep.subr.mxu0 0.0
    %236 = vmatpush1.msra.mxu0 %v135
    %237 = vmatprep.subr.mxu0 0.0
    %238 = vmatpush1.msra.mxu0 %v136
    %239 = vmatprep.subr.mxu0 0.0
    %240 = vmatpush1.msra.mxu0 %v137
    %241 = vmatprep.subr.mxu0 0.0
    %242 = vmatpush1.msra.mxu0 %v138
    %243 = vmatprep.subr.mxu0 0.0
    %244 = vmatpush1.msra.mxu0 %v139
    %245 = vmatprep.subr.mxu0 0.0
    %246 = vmatpush1.msra.mxu0 %v140
    %247 = vmatprep.subr.mxu0 0.0
    %248 = vmatpush1.msra.mxu0 %v141
    %249 = vmatprep.subr.mxu0 0.0
    %250 = vmatpush1.msra.mxu0 %v142
    %251 = vmatprep.subr.mxu0 0.0
    %252 = vmatpush1.msra.mxu0 %v143
    %253 = vmatprep.subr.mxu0 0.0
    %254 = vmatpush1.msra.mxu0 %v144
    %255 = vmatprep.subr.mxu0 0.0
    %256 = vmatpush1.msra.mxu0 %v145
    %257 = vmatprep.subr.mxu0 0.0
    %258 = vmatpush1.msra.mxu0 %v146
    %259 = vmatprep.subr.mxu0 0.0
    %260 = vmatpush1.msra.mxu0 %v147
    %261 = vmatprep.subr.mxu0 0.0
    %262 = vmatpush1.msra.mxu0 %v148
    %263 = vmatprep.subr.mxu0 0.0
    %264 = vmatpush1.msra.mxu0 %v149
    %265 = vmatprep.subr.mxu0 0.0
    %266 = vmatpush1.msra.mxu0 %v150
    %267 = vmatprep.subr.mxu0 0.0
    %268 = vmatpush1.msra.mxu0 %v151
    %269 = vmatprep.subr.mxu0 0.0
    %270 = vmatpush1.msra.mxu0 %v152
    %271 = vmatprep.subr.mxu0 0.0
    %272 = vmatpush1.msra.mxu0 %v153
    %273 = vmatprep.subr.mxu0 0.0
    %274 = vmatpush1.msra.mxu0 %v154
    %275 = vmatprep.mubr.f32.mxu0 %v204
    %276 = vmatmul.mubr.f32.gmra.mrb[0].mxu0 %v203
    %v277 = vpop.f32.mrb[0].mxu0
    %v278 = vadd.f32 %v192, %v277
    %v279 = vpop.f32.mrb[0].mxu0
    %280 = vdwg.mxu0
    %281 = vmatprep.subr.mxu0 0.0
    %282 = vmatpush1.msra.mxu0 %v155
    %283 = vmatprep.subr.mxu0 0.0
    %284 = vmatpush1.msra.mxu0 %v156
    %285 = vmatprep.subr.mxu0 0.0
    %286 = vmatpush1.msra.mxu0 %v157
    %287 = vmatprep.subr.mxu0 0.0
    %288 = vmatpush1.msra.mxu0 %v158
    %289 = vmatprep.subr.mxu0 0.0
    %290 = vmatpush1.msra.mxu0 %v159
    %291 = vmatprep.subr.mxu0 0.0
    %292 = vmatpush1.msra.mxu0 %v160
    %293 = vmatprep.subr.mxu0 0.0
    %294 = vmatpush1.msra.mxu0 %v161
    %295 = vmatprep.subr.mxu0 0.0
    %296 = vmatpush1.msra.mxu0 %v162
    %297 = vmatprep.subr.mxu0 0.0
    %298 = vmatpush1.msra.mxu0 %v163
    %299 = vmatprep.subr.mxu0 0.0
    %300 = vmatpush1.msra.mxu0 %v164
    %301 = vmatprep.subr.mxu0 0.0
    %302 = vmatpush1.msra.mxu0 %v165
    %303 = vmatprep.subr.mxu0 0.0
    %304 = vmatpush1.msra.mxu0 %v166
    %305 = vmatprep.subr.mxu0 0.0
    %306 = vmatpush1.msra.mxu0 %v167
    %307 = vmatprep.subr.mxu0 0.0
    %308 = vmatpush1.msra.mxu0 %v168
    %309 = vmatprep.subr.mxu0 0.0
    %310 = vmatpush1.msra.mxu0 %v169
    %311 = vmatprep.subr.mxu0 0.0
    %312 = vmatpush1.msra.mxu0 %v170
    %313 = vmatprep.subr.mxu0 0.0
    %314 = vmatpush1.msra.mxu0 %v171
    %315 = vmatprep.subr.mxu0 0.0
    %316 = vmatpush1.msra.mxu0 %v172
    %317 = vmatprep.subr.mxu0 0.0
    %318 = vmatpush1.msra.mxu0 %v173
    %319 = vmatprep.subr.mxu0 0.0
    %320 = vmatpush1.msra.mxu0 %v174
    %321 = vmatprep.subr.mxu0 0.0
    %322 = vmatpush1.msra.mxu0 %v175
    %323 = vmatprep.subr.mxu0 0.0
    %324 = vmatpush1.msra.mxu0 %v176
    %325 = vmatprep.subr.mxu0 0.0
    %326 = vmatpush1.msra.mxu0 %v177
    %327 = vmatprep.subr.mxu0 0.0
    %328 = vmatpush1.msra.mxu0 %v178
    %329 = vmatprep.subr.mxu0 0.0
    %330 = vmatpush1.msra.mxu0 %v179
    %331 = vmatprep.subr.mxu0 0.0
    %332 = vmatpush1.msra.mxu0 %v180
    %333 = vmatprep.subr.mxu0 0.0
    %334 = vmatpush1.msra.mxu0 %v181
    %335 = vmatprep.subr.mxu0 0.0
    %336 = vmatpush1.msra.mxu0 %v182
    %337 = vmatprep.subr.mxu0 0.0
    %338 = vmatpush1.msra.mxu0 %v183
    %339 = vmatprep.subr.mxu0 0.0
    %340 = vmatpush1.msra.mxu0 %v184
    %341 = vmatprep.subr.mxu0 0.0
    %342 = vmatpush1.msra.mxu0 %v185
    %343 = vmatprep.subr.mxu0 0.0
    %344 = vmatpush1.msra.mxu0 %v186
    %345 = vmatprep.mubr.f32.mxu0 %v206
    %346 = vmatmul.mubr.f32.gmra.mrb[0].mxu0 %v205
    %v347 = vpop.f32.mrb[0].mxu0
    %v348 = vadd.f32 %v278, %v347
    %v349 = vpop.f32.mrb[0].mxu0
    %350 = vdwg.mxu0
    %351 = vst [vmem:[#allocation7] sm:$0x3] %v348
    // Predicated region
    $region22: #{tpu_custom_call.1} parent=1 // pred_check
      _
    $region23: #{tpu_custom_call.1} parent=1 // pred_check_branch
      %353 = sbr.rel (0) target = $region25
    $region24: #{tpu_custom_call.1} parent=1 // pred_region
      %s355 = ssub.s32 32, 32
      %356 = vsyncadd [#allocation4], %s355
      %s358 = sshll.u32 [#allocation7], 4
      %s359 = int_to_ptr.vmem [resolvable:$true] %s358
      %361 = dma.vmem_to_hbm [thread:$0]  %s359, 32, %s3, [#allocation4]
    $region25: #{tpu_custom_call.1} parent=1 // pred_fallthru
      _
    // Predicated region
    $region26: #{tpu_custom_call.1} parent=1 // pred_check
      _
    $region27: #{tpu_custom_call.1} parent=1 // pred_check_branch
      %363 = sbr.rel (0) target = $region29
    $region28: #{tpu_custom_call.1} parent=1 // pred_region
      %364 = dma.done [#allocation4], 32
    $region29: #{tpu_custom_call.1} parent=1 // pred_fallthru
      _
    %365 = vsyncpa [#allocation3], 1
    %366 = vsyncpa [#allocation6], 1
    %367 = vsyncpa [#allocation4], 1

</llo_original>
